<compile_context>
chip_gen: v5e
topology: v5e:2x2
jax: 0.10.0
libtpu: 0.0.40
codegen_flags: <defaults>
</compile_context>

<pallas_src>
import functools

import jax
import jax.numpy as jnp
from jax.experimental import pallas as pl
from jax.experimental.pallas import tpu as pltpu

# Module-consistent demo sizes (the PyTorch module hardcodes N1=N2=320, Nc=16,
# reso=5; scaled down keeping the same structure: center = N - 32*reso).
N1 = 64
N2 = 64
NC = 4
RESO = 1
BATCH = 2


def _recon_kernel(x_ref, m_ref, o_ref, *, lo, hi, tr):
    # x_ref: (TB, TR, 2*N2) slab block; m_ref: resident center mask (W1, 2*N2);
    # o_ref: (TB, TR, 2*N2).  Row blocks outside [lo, hi) are the all-zero band.
    r = pl.program_id(1)
    is_center = jnp.logical_and(r >= lo, r < hi)

    @pl.when(is_center)
    def _():
        rc = jnp.clip(r, lo, hi - 1)                 # defensive clamp (OOB-safe)
        off = pl.multiple_of((rc - lo) * tr, tr)     # aligned sublane slice
        m = m_ref[pl.ds(off, tr), :]                 # (TR, 2*N2)
        o_ref[...] = x_ref[...] * m                  # broadcast over slabs

    @pl.when(jnp.logical_not(is_center))
    def _():
        # Zero band: write zeros, never read kspace for these rows.
        o_ref[...] = jnp.zeros_like(o_ref)


def recon_forward(kspace, weight, *, block_bytes=2 << 20):
    """kspace: (B, Nc, N1, N2, 2) f32; weight: (N1-32r, N2-32r) f32."""
    B, C, n1, n2, two = kspace.shape
    assert two == 2
    w1, w2 = weight.shape
    pad1 = (n1 - w1) // 2
    pad2 = (n2 - w2) // 2
    assert n1 - 2 * pad1 == w1 and n2 - 2 * pad2 == w2

    dtype = kspace.dtype
    itemsize = jnp.dtype(dtype).itemsize
    lanes = 2 * n2

    # --- row tiling aligned to the zero band (zero blocks skip input DMAs).
    if pad1 > 0 and n1 % pad1 == 0 and pad1 % 8 == 0 and n1 // pad1 >= 3:
        tr = pad1
        nrb = n1 // tr
        lo, hi = 1, nrb - 1                       # center row-blocks are [lo, hi)
        mask_rows = w1                            # only center rows ever read
        mask_c = jnp.zeros((w1, n2), dtype=dtype)
        mask_c = jax.lax.dynamic_update_slice(mask_c, weight.astype(dtype), (0, pad2))
    else:
        tr = n1                                   # fallback: single row block
        nrb = 1
        lo, hi = 0, 1
        mask_rows = n1
        mask_c = jnp.zeros((n1, n2), dtype=dtype)
        mask_c = jax.lax.dynamic_update_slice(mask_c, weight.astype(dtype), (pad1, pad2))

    # Fold (N2, 2) into lanes: m2[:, 2j] == m2[:, 2j+1] == mask[:, j].
    mask2 = jnp.repeat(mask_c, 2, axis=1)         # (mask_rows, 2*N2)

    # --- slab (batch*coil) tiling: biggest divisor of B*C under the budget,
    #     keeping >= 2 slab steps so the parallel axis can be split (megacore).
    n_slabs = B * C
    x = kspace.reshape(n_slabs, n1, lanes)
    per_slab = tr * lanes * itemsize
    max_tb = max(1, n_slabs // 2)
    tb = 1
    for cand in range(1, max_tb + 1):
        if n_slabs % cand == 0 and cand * per_slab <= block_bytes:
            tb = cand

    def x_map(s, r):
        # Clamp zero row-blocks onto the adjacent center block: consecutive
        # grid steps then revisit the same block index -> no extra input DMA.
        rc = jnp.minimum(jnp.maximum(r, lo), hi - 1)
        return (s, rc, 0)

    kernel = functools.partial(_recon_kernel, lo=lo, hi=hi, tr=tr)

    out = pl.pallas_call(
        kernel,
        out_shape=jax.ShapeDtypeStruct((n_slabs, n1, lanes), dtype),
        grid_spec=pltpu.PrefetchScalarGridSpec(
            num_scalar_prefetch=0,
            grid=(n_slabs // tb, nrb),                        # row axis innermost
            in_specs=[
                pl.BlockSpec((tb, tr, lanes), x_map),
                pl.BlockSpec((mask_rows, lanes), lambda s, r: (0, 0)),  # DMA'd once
            ],
            out_specs=pl.BlockSpec((tb, tr, lanes), lambda s, r: (s, r, 0)),
        ),
        compiler_params=pltpu.CompilerParams(
            dimension_semantics=("parallel", "arbitrary"),
            vmem_limit_bytes=32 << 20,
        ),
    )(x, mask2)

    return out.reshape(B, C, n1, n2, 2)


if __name__ == "__main__":
    key = jax.random.PRNGKey(0)
    kspace = jax.random.normal(key, (BATCH, NC, N1, N2, 2), dtype=jnp.float32)

    # Deterministic parameter init, matching the module: 0.5 * ones(...)
    weight = 0.5 * jnp.ones((N1 - 32 * RESO, N2 - 32 * RESO), dtype=jnp.float32)

    out = jax.block_until_ready(recon_forward(kspace, weight))

    # Reference check (plain JAX, mirrors the PyTorch forward exactly).
    pad = 16 * RESO
    mask_ref = jnp.zeros((N1, N2), dtype=jnp.float32)
    mask_ref = jax.lax.dynamic_update_slice(mask_ref, weight, (pad, pad))
    ref = mask_ref[None, None, :, :, None] * kspace
    assert jnp.allclose(out, ref, atol=1e-6), "mismatch vs reference"

    print("KERNEL_OK")
</pallas_src>

<mosaic_0001>
module attributes {stable_mosaic.version = 11 : i64} {
  func.func @_recon_kernel(%arg0: i32, %arg1: i32, %arg2: memref<4x16x128xf32, #tpu.memory_space<vmem>>, %arg3: memref<32x128xf32, #tpu.memory_space<vmem>>, %arg4: memref<4x16x128xf32, #tpu.memory_space<vmem>>) attributes {dimension_semantics = [#tpu.dimension_semantics<parallel>, #tpu.dimension_semantics<arbitrary>], iteration_bounds = array<i64: 2, 4>, scalar_prefetch = 0 : i64, scratch_operands = 0 : i64, tpu.core_type = #tpu.core_type<tc>, window_params = [{transform_indices = @transform_0, window_bounds = array<i64: 4, 16, 128>}, {pipeline_mode = #tpu.pipeline_mode<synchronous>, transform_indices = @transform_1, window_bounds = array<i64: 32, 128>}, {transform_indices = @transform_2, window_bounds = array<i64: 4, 16, 128>}]} {
    %c1_i32 = arith.constant 1 : i32
    %0 = arith.cmpi sge, %arg1, %c1_i32 : i32
    %c3_i32 = arith.constant 3 : i32
    %1 = arith.cmpi slt, %arg1, %c3_i32 : i32
    %2 = arith.andi %0, %1 : i1
    %3 = arith.extui %2 : i1 to i32
    %c0_i32 = arith.constant 0 : i32
    %4 = arith.cmpi ne, %3, %c0_i32 : i32
    scf.if %4 {
      %c1_i32_1 = arith.constant 1 : i32
      %c2_i32 = arith.constant 2 : i32
      %8 = arith.maxsi %c1_i32_1, %arg1 : i32
      %9 = arith.minsi %c2_i32, %8 : i32
      %c1_i32_2 = arith.constant 1 : i32
      %10 = arith.subi %9, %c1_i32_2 : i32
      %c16_i32 = arith.constant 16 : i32
      %11 = arith.muli %10, %c16_i32 : i32
      %12 = tpu.assume_multiple %11, 16 : i32
      %13 = arith.index_cast %12 : i32 to index
      %c0 = arith.constant 0 : index
      %14 = vector.load %arg3[%13, %c0] : memref<32x128xf32, #tpu.memory_space<vmem>>, vector<16x128xf32>
      %c0_3 = arith.constant 0 : index
      %c0_4 = arith.constant 0 : index
      %c0_5 = arith.constant 0 : index
      %15 = vector.load %arg2[%c0_3, %c0_4, %c0_5] : memref<4x16x128xf32, #tpu.memory_space<vmem>>, vector<4x16x128xf32>
      %16 = vector.shape_cast %14 : vector<16x128xf32> to vector<1x16x128xf32>
      %17 = vector.broadcast %16 : vector<1x16x128xf32> to vector<4x16x128xf32>
      %18 = arith.mulf %15, %17 : vector<4x16x128xf32>
      %c0_6 = arith.constant 0 : index
      %c0_7 = arith.constant 0 : index
      %c0_8 = arith.constant 0 : index
      %19 = vector.load %arg4[%c0_6, %c0_7, %c0_8] : memref<4x16x128xf32, #tpu.memory_space<vmem>>, vector<4x16x128xf32>
      tpu.vector_store %arg4[%c0_6, %c0_7, %c0_8], %18 {strides = array<i32>} : memref<4x16x128xf32, #tpu.memory_space<vmem>>, vector<4x16x128xf32>,
    } else {
    }
    %true = arith.constant true
    %5 = arith.xori %2, %true : i1
    %6 = arith.extui %5 : i1 to i32
    %c0_i32_0 = arith.constant 0 : i32
    %7 = arith.cmpi ne, %6, %c0_i32_0 : i32
    scf.if %7 {
      %cst = arith.constant 0.000000e+00 : f32
      %8 = vector.broadcast %cst : f32 to vector<4x16x128xf32>
      %c0 = arith.constant 0 : index
      %c0_1 = arith.constant 0 : index
      %c0_2 = arith.constant 0 : index
      %9 = vector.load %arg4[%c0, %c0_1, %c0_2] : memref<4x16x128xf32, #tpu.memory_space<vmem>>, vector<4x16x128xf32>
      tpu.vector_store %arg4[%c0, %c0_1, %c0_2], %8 {strides = array<i32>} : memref<4x16x128xf32, #tpu.memory_space<vmem>>, vector<4x16x128xf32>,
    } else {
    }
    return
  }
  func.func @transform_0(%arg0: i32, %arg1: i32) -> (i32, i32, i32) {
    %c1_i32 = arith.constant 1 : i32
    %0 = arith.maxsi %arg1, %c1_i32 : i32
    %c2_i32 = arith.constant 2 : i32
    %1 = arith.minsi %0, %c2_i32 : i32
    %c0_i32 = arith.constant 0 : i32
    %c0_i32_0 = arith.constant 0 : i32
    return %arg0, %1, %c0_i32 : i32, i32, i32
  }
  func.func @transform_1(%arg0: i32, %arg1: i32) -> (i32, i32) {
    %c0_i32 = arith.constant 0 : i32
    %c0_i32_0 = arith.constant 0 : i32
    %c0_i32_1 = arith.constant 0 : i32
    return %c0_i32, %c0_i32_0 : i32, i32
  }
  func.func @transform_2(%arg0: i32, %arg1: i32) -> (i32, i32, i32) {
    %c0_i32 = arith.constant 0 : i32
    %c0_i32_0 = arith.constant 0 : i32
    return %arg0, %arg1, %c0_i32 : i32, i32, i32
  }
}

</mosaic_0001>

<llo_original>
// kernel: tpu_custom_call.1
$region0: #{tpu_custom_call.1}
  #allocation0 [shape = 'u32[]', space=smem, size = 0x4, offset = 0x4, fixed_abs, tag = 'smem constant byte address 0x4 - core index']
  #allocation1 [shape = 'u32[72,128]{1,0:T(1,128)}', space=vmem, size = 0x9000, scoped, tag = 'internal scratch']
  #allocation8 [shape = 's32[]', space=sflag, size = 0x4, offset = 0, fixed_abs, tag = 'sflag constant byte address 0x0 - dummy sync flag']
  #allocation10 [shape = 's32[]', space=sflag, size = 0x4, offset = 0, fixed_abs, tag = 'sflag constant byte address 0x0 - dummy sync flag']
  %s0 = inlined_call_operand.hbm [shape: f32[8,64,128], index: 0, kind: input, shape index: {}]
  %s1 = inlined_call_operand.hbm [shape: f32[32,128], index: 1, kind: input, shape index: {}]
  %s2 = inlined_call_operand.hbm [shape: f32[8,64,128], index: 2, kind: output, shape index: {}]
  %s3 = sld [smem:[#allocation0]]
  $region57: #{tpu_custom_call.1} parent=0
    _
  %s5 = ssub.s32 1, %s3
  %s6 = scalar_select 0, %s5, %s3
  $region1: #{tpu_custom_call.1} parent=0
    #allocation2 [shape = 'u8[65536]{0}', space=vmem, size = 0x10000, scoped, tag = 'input window, operand 0']
    #allocation3 [shape = 's32[2]{0}', space=sflag, size = 0x8, scoped, tag = 'scoped memory for tpu_custom_call.1']
    #allocation4 [shape = 's32[2]{0}', space=sflag, size = 0x8, scoped, tag = 'scoped memory for tpu_custom_call.1']
    #allocation5 [shape = 'u8[16384]{0}', space=vmem, size = 0x4000, scoped, tag = 'input window, operand 1, single buffered']
    #allocation6 [shape = 's32[1]{0}', space=sflag, size = 0x4, scoped, tag = 'scoped memory for tpu_custom_call.1']
    #allocation7 [shape = 'u8[65536]{0}', space=vmem, size = 0x10000, scoped, tag = 'output window, operand 0']
    %7 = vsyncpa [#allocation3], 0
    %s8 = scalar_lea.sflag [#allocation3], 1
    %9 = vsyncpa %s8, 0
    %10 = vsyncpa [#allocation6], 0
    %11 = vsyncpa [#allocation4], 0
    %s12 = scalar_lea.sflag [#allocation4], 1
    %13 = vsyncpa %s12, 0
    loop: start=0, step=1, limit=10
    $region2: #{tpu_custom_call.1} parent=1 // loop_pre_header
      _
    $region3: #{tpu_custom_call.1} parent=1 // loop_header
      %s15 = sphi 0, %s19
      %p16 = scmp.ge.s32.totalorder %s15, 10
      %s22 = sphi 0, %s34
      %s23 = sphi 0, %s30
      %s24 = sphi 0, %s22
      %s25 = sphi 0, %s23
      %s26 = sphi 0, %s24
      %s27 = sphi 0, %s25
      %s47 = sphi 0, %s49
      %s50 = sphi 0, %s47
      %s51 = sphi 0, %s50
      %s67 = sphi 0, %s51
      %s71 = sphi 0, %s71
      %s73 = sphi 0, %s71
      %s74 = sphi 0, %s73
      %s88 = sphi 0, %s74
      %s96 = sphi 0, %s98
      %s99 = sphi 0, %s96
      %s100 = sphi 0, %s99
      %s116 = sphi 0, %s100
    $region4: #{tpu_custom_call.1} parent=1 // loop_header_branch
      %18 = sbr.rel (%p16) target = $region8
    $region5: #{tpu_custom_call.1} parent=1 // loop_body
      %s20 = ssub.s32 %s15, 1
      %s21 = ssub.s32 %s15, 2
      %s28 = sadd.s32 1, %s23
      %p29 = scmp.ge.s32.totalorder %s28, 4
      %s30 = scalar_select %p29, 0, %s28
      %s31 = sadd.s32 1, %s22
      %s32 = scalar_select %p29, %s31, %s22
      %p33 = scmp.ge.s32.totalorder %s32, 2
      %s34 = scalar_select %p33, 0, %s32
      %p35 = scmp.gt.s32.totalorder %s23, 1
      %s36 = scalar_select %p35, %s23, 1
      %p37 = scmp.lt.s32.totalorder %s36, 2
      %s38 = scalar_select %p37, %s36, 2
      %p39 = scmp.gt.s32.totalorder %s30, 1
      %s40 = scalar_select %p39, %s30, 1
      %p41 = scmp.lt.s32.totalorder %s40, 2
      %s42 = scalar_select %p41, %s40, 2
      %s43 = ssub.s32 %s22, %s34
      %s44 = ssub.s32 %s38, %s42
      %s45 = sor.u32 %s43, %s44
      %p46 = scmp.eq.s32.totalorder %s45, 0
      %s48 = sadd.s32 %s47, 1
      %s49 = scalar_select %p46, %s47, %s48
      %p52 = pneg %p46
      %p53 = scmp.eq.s32.totalorder %s15, 7
      %p54 = por %p52, %p53
      %p55 = scmp.ne.s32.totalorder %s47, %s50
      %p56 = scmp.eq.s32.totalorder %s15, 0
      %p57 = por %p55, %p56
      %p58 = scmp.ne.s32.totalorder %s47, %s50
      %p59 = scmp.eq.s32.totalorder %s20, 7
      %p60 = por %p58, %p59
      %p61 = scmp.ne.s32.totalorder %s50, %s51
      %p62 = scmp.eq.s32.totalorder %s20, 0
      %p63 = por %p61, %p62
      %p64 = scmp.ne.s32.totalorder %s50, %s51
      %p65 = scmp.eq.s32.totalorder %s21, 7
      %p66 = por %p64, %p65
      %p68 = scmp.ne.s32.totalorder %s51, %s67
      %p69 = scmp.eq.s32.totalorder %s21, 0
      %p70 = por %p68, %p69
      %s72 = sadd.s32 %s71, 1
      %p75 = scmp.eq.s32.totalorder %s15, 7
      %p76 = scmp.ne.s32.totalorder %s71, %s73
      %p77 = scmp.eq.s32.totalorder %s15, 0
      %p78 = por %p76, %p77
      %p79 = scmp.ne.s32.totalorder %s71, %s73
      %p80 = scmp.eq.s32.totalorder %s20, 7
      %p81 = por %p79, %p80
      %p82 = scmp.ne.s32.totalorder %s73, %s74
      %p83 = scmp.eq.s32.totalorder %s20, 0
      %p84 = por %p82, %p83
      %p85 = scmp.ne.s32.totalorder %s73, %s74
      %p86 = scmp.eq.s32.totalorder %s21, 7
      %p87 = por %p85, %p86
      %p89 = scmp.ne.s32.totalorder %s74, %s88
      %p90 = scmp.eq.s32.totalorder %s21, 0
      %p91 = por %p89, %p90
      %s92 = ssub.s32 %s22, %s34
      %s93 = ssub.s32 %s23, %s30
      %s94 = sor.u32 %s92, %s93
      %p95 = scmp.eq.s32.totalorder %s94, 0
      %s97 = sadd.s32 %s96, 1
      %s98 = scalar_select %p95, %s96, %s97
      %p101 = pneg %p95
      %p102 = scmp.eq.s32.totalorder %s15, 7
      %p103 = por %p101, %p102
      %p104 = scmp.ne.s32.totalorder %s96, %s99
      %p105 = scmp.eq.s32.totalorder %s15, 0
      %p106 = por %p104, %p105
      %p107 = scmp.ne.s32.totalorder %s96, %s99
      %p108 = scmp.eq.s32.totalorder %s20, 7
      %p109 = por %p107, %p108
      %p110 = scmp.ne.s32.totalorder %s99, %s100
      %p111 = scmp.eq.s32.totalorder %s20, 0
      %p112 = por %p110, %p111
      %p113 = scmp.ne.s32.totalorder %s99, %s100
      %p114 = scmp.eq.s32.totalorder %s21, 7
      %p115 = por %p113, %p114
      %p117 = scmp.ne.s32.totalorder %s100, %s116
      %p118 = scmp.eq.s32.totalorder %s21, 0
      %p119 = por %p117, %p118
      %p120 = scmp.le.s32.totalorder 1, %s15
      %p121 = scmp.lt.s32.totalorder %s15, 9
      %p122 = pnand %p120, %p121
      %p123 = pneg %p122
      // Predicated region
      $region9: #{tpu_custom_call.1} parent=5 // pred_check
        _
      $region10: #{tpu_custom_call.1} parent=5 // pred_check_branch
        %125 = sbr.rel (%p122) target = $region12
      $region11: #{tpu_custom_call.1} parent=5 // pred_region
        %s126 = ssub.s32 %s15, 1
        // Predicated region
        $region13: #{tpu_custom_call.1} parent=11 // pred_check
          %p127 = pneg %p84
        $region14: #{tpu_custom_call.1} parent=11 // pred_check_branch
          %129 = sbr.rel (%p127) target = $region16
        $region15: #{tpu_custom_call.1} parent=11 // pred_region
          %131 = vsyncadd [#allocation6], 0
          %s132 = sshll.u32 %s1, 4
          %s133 = int_to_ptr.hbm [resolvable:$true] %s132
          %s134 = sshll.u32 [#allocation5], 4
          %s135 = int_to_ptr.vmem [resolvable:$true] %s134
          %140 = dma.hbm_to_vmem [thread:$0]  %s133, 512, %s135, [#allocation6], 128, 128, 8
        $region16: #{tpu_custom_call.1} parent=11 // pred_fallthru
          _
      $region12: #{tpu_custom_call.1} parent=5 // pred_fallthru
        _
      %p141 = scmp.lt.s32.totalorder %s15, 8
      // Predicated region
      $region17: #{tpu_custom_call.1} parent=5 // pred_check
        %p142 = pneg %p141
      $region18: #{tpu_custom_call.1} parent=5 // pred_check_branch
        %144 = sbr.rel (%p142) target = $region20
      $region19: #{tpu_custom_call.1} parent=5 // pred_region
        // Predicated region
        $region21: #{tpu_custom_call.1} parent=19 // pred_check
          %p145 = pneg %p57
        $region22: #{tpu_custom_call.1} parent=19 // pred_check_branch
          %147 = sbr.rel (%p145) target = $region24
        $region23: #{tpu_custom_call.1} parent=19 // pred_region
          #allocation9 [shape = 'u32[6]{0}', space=smem, size = 0x18, scoped, tag = 'DMA stride descriptor']
          %s148 = sand.u32 %s47, 1
          %s149 = scalar_lea.sflag [#allocation3], %s148
          %s150 = sand.u32 %s47, 1
          %s151 = smul.addr %s150, 64
          %s152 = scalar_lea.vmem [#allocation2], %s151
          %p153 = scmp.gt.s32.totalorder %s23, 1
          %s154 = scalar_select %p153, %s23, 1
          %p155 = scmp.lt.s32.totalorder %s154, 2
          %s156 = scalar_select %p155, %s154, 2
          %s157 = smul.u32 4, %s22
          %s158 = smul.u32 2, %s156
          %160 = vsyncadd %s149, 0
          %s161 = smul.addr %s157, 8
          %s162 = sadd.s32 %s158, %s161
          %s163 = smul.addr %s162, 8
          %s164 = scalar_lea.hbm %s0, %s163
          %s166 = sshll.u32 1, 14
          %s167 = sxor.u32 4294967295, %s166
          %s169 = sld [smem:[#allocation0]]
          %s170 = sadd.s32 2, %s169
          %s172 = sshll.u32 7, 26
          %s173 = sxor.u32 4294967295, %s172
          %s174 = sand.u32 0, %s173
          %s175 = sshll.u32 %s170, 26
          %s176 = sor.u32 %s174, %s175
          %s177 = sshll.u32 %s164, 4
          %s178 = int_to_ptr.hbm [resolvable:$true] %s177
          %s179 = sshll.u32 %s152, 4
          %s180 = int_to_ptr.vmem [resolvable:$true] %s179
          %186 = sst [smem:[#allocation9]] 1024
          %s187 = scalar_lea.smem [#allocation9], 1
          %188 = sst [smem:[%s187]] 256
          %s189 = scalar_lea.smem [#allocation9], 2
          %190 = sst [smem:[%s189]] 2
          %s191 = scalar_lea.smem [#allocation9], 3
          %192 = sst [smem:[%s191]] 128
          %s193 = scalar_lea.smem [#allocation9], 4
          %194 = sst [smem:[%s193]] 128
          %s195 = scalar_lea.smem [#allocation9], 5
          %196 = sst [smem:[%s195]] 8
          %198 = dma.general %s178, 1024, %s180, %s149, [#allocation8], [#allocation9], %s176, 0
        $region24: #{tpu_custom_call.1} parent=19 // pred_fallthru
          _
      $region20: #{tpu_custom_call.1} parent=5 // pred_fallthru
        _
      %p199 = scmp.le.s32.totalorder 1, %s15
      %p200 = scmp.lt.s32.totalorder %s15, 9
      %p201 = pnand %p199, %p200
      %p202 = pneg %p201
      // Predicated region
      $region25: #{tpu_custom_call.1} parent=5 // pred_check
        _
      $region26: #{tpu_custom_call.1} parent=5 // pred_check_branch
        %204 = sbr.rel (%p201) target = $region28
      $region27: #{tpu_custom_call.1} parent=5 // pred_region
        %s205 = ssub.s32 %s15, 1
        %s206 = sand.u32 %s50, 1
        %s207 = scalar_lea.sflag [#allocation3], %s206
        %s208 = sand.u32 %s50, 1
        %s209 = smul.addr %s208, 64
        %s210 = scalar_lea.vmem [#allocation2], %s209
        // Predicated region
        $region29: #{tpu_custom_call.1} parent=27 // pred_check
          %p211 = pneg %p63
        $region30: #{tpu_custom_call.1} parent=27 // pred_check_branch
          %213 = sbr.rel (%p211) target = $region32
        $region31: #{tpu_custom_call.1} parent=27 // pred_region
          %215 = dma.done %s207, 1024
        $region32: #{tpu_custom_call.1} parent=27 // pred_fallthru
          _
        // Predicated region
        $region33: #{tpu_custom_call.1} parent=27 // pred_check
          %p216 = pneg %p84
        $region34: #{tpu_custom_call.1} parent=27 // pred_check_branch
          %218 = sbr.rel (%p216) target = $region36
        $region35: #{tpu_custom_call.1} parent=27 // pred_region
          %220 = dma.done [#allocation6], 512
        $region36: #{tpu_custom_call.1} parent=27 // pred_fallthru
          _
        %s221 = sand.u32 %s50, 1
        %s222 = scalar_lea.sflag [#allocation3], %s221
        %s223 = sand.u32 %s50, 1
        %s224 = smul.addr %s223, 64
        %s225 = scalar_lea.vmem [#allocation2], %s224
        %p226 = pneg %p63
        %p227 = pneg %p60
        %p228 = pneg %p84
        %p229 = pneg %p81
        %p230 = pneg %p112
        %p231 = pneg %p109
        %s232 = sand.u32 %s99, 1
        %s233 = scalar_lea.sflag [#allocation4], %s232
        %s234 = sand.u32 %s99, 1
        %s235 = smul.addr %s234, 64
        %s236 = scalar_lea.vmem [#allocation7], %s235
        %p237 = scmp.gt.s32.totalorder %s25, 1
        %s238 = scalar_select %p237, %s25, 1
        %p239 = scmp.lt.s32.totalorder %s238, 2
        %s240 = scalar_select %p239, %s238, 2
        %s241 = smul.u32 4, %s24
        %s242 = smul.u32 2, %s240
        %s243 = smul.u32 4, %s24
        %s244 = smul.u32 2, %s25
        %p245 = scmp.ge.s32.totalorder %s25, 1
        %p246 = scmp.lt.s32.totalorder %s25, 3
        %p247 = pnand %p245, %p246
        %p248 = pneg %p247
        // Predicated region
        $region37: #{tpu_custom_call.1} parent=27 // pred_check
          _
        $region38: #{tpu_custom_call.1} parent=27 // pred_check_branch
          %250 = sbr.rel (%p247) target = $region40
        $region39: #{tpu_custom_call.1} parent=27 // pred_region
          %p251 = scmp.gt.s32.totalorder %s25, 1
          %s252 = scalar_select %p251, %s25, 1
          %p253 = scmp.lt.s32.totalorder %s252, 2
          %s254 = scalar_select %p253, %s252, 2
          %s255 = ssub.s32 %s254, 1
          %s256 = smul.u32 %s255, 16
          %s257 = scalar_lea.vmem [#allocation5], %s256
          %v258 = vld [vmem:[%s257] sm:$0xff]
          %v259 = vld [vmem:[%s257 + $0x8] sm:$0xff]
          %v260 = vld [vmem:[%s210] sm:$0xff]
          %v261 = vld [vmem:[%s210 + $0x8] sm:$0xff]
          %v262 = vld [vmem:[%s210 + $0x10] sm:$0xff]
          %v263 = vld [vmem:[%s210 + $0x18] sm:$0xff]
          %v264 = vld [vmem:[%s210 + $0x20] sm:$0xff]
          %v265 = vld [vmem:[%s210 + $0x28] sm:$0xff]
          %v266 = vld [vmem:[%s210 + $0x30] sm:$0xff]
          %v267 = vld [vmem:[%s210 + $0x38] sm:$0xff]
          %v268 = vmul.f32 %v260, %v258
          %v269 = vmul.f32 %v261, %v259
          %v270 = vmul.f32 %v262, %v258
          %v271 = vmul.f32 %v263, %v259
          %v272 = vmul.f32 %v264, %v258
          %v273 = vmul.f32 %v265, %v259
          %v274 = vmul.f32 %v266, %v258
          %v275 = vmul.f32 %v267, %v259
          %276 = vst [vmem:[%s236] sm:$0xff] %v268
          %277 = vst [vmem:[%s236 + $0x8] sm:$0xff] %v269
          %278 = vst [vmem:[%s236 + $0x10] sm:$0xff] %v270
          %279 = vst [vmem:[%s236 + $0x18] sm:$0xff] %v271
          %280 = vst [vmem:[%s236 + $0x20] sm:$0xff] %v272
          %281 = vst [vmem:[%s236 + $0x28] sm:$0xff] %v273
          %282 = vst [vmem:[%s236 + $0x30] sm:$0xff] %v274
          %283 = vst [vmem:[%s236 + $0x38] sm:$0xff] %v275
        $region40: #{tpu_custom_call.1} parent=27 // pred_fallthru
          _
        %p284 = pneg %p248
        // Predicated region
        $region41: #{tpu_custom_call.1} parent=27 // pred_check
          _
        $region42: #{tpu_custom_call.1} parent=27 // pred_check_branch
          %286 = sbr.rel (%p248) target = $region44
        $region43: #{tpu_custom_call.1} parent=27 // pred_region
          %287 = vst [vmem:[%s236] sm:$0xff] 0.0
          %288 = vst [vmem:[%s236 + $0x8] sm:$0xff] 0.0
          %289 = vst [vmem:[%s236 + $0x10] sm:$0xff] 0.0
          %290 = vst [vmem:[%s236 + $0x18] sm:$0xff] 0.0
          %291 = vst [vmem:[%s236 + $0x20] sm:$0xff] 0.0
          %292 = vst [vmem:[%s236 + $0x28] sm:$0xff] 0.0
          %293 = vst [vmem:[%s236 + $0x30] sm:$0xff] 0.0
          %294 = vst [vmem:[%s236 + $0x38] sm:$0xff] 0.0
        $region44: #{tpu_custom_call.1} parent=27 // pred_fallthru
          _
        %s295 = sand.u32 %s99, 1
        %s296 = scalar_lea.sflag [#allocation4], %s295
        %s297 = sand.u32 %s99, 1
        %s298 = smul.addr %s297, 64
        %s299 = scalar_lea.vmem [#allocation7], %s298
        // Predicated region
        $region45: #{tpu_custom_call.1} parent=27 // pred_check
          %p300 = pneg %p109
        $region46: #{tpu_custom_call.1} parent=27 // pred_check_branch
          %302 = sbr.rel (%p300) target = $region48
        $region47: #{tpu_custom_call.1} parent=27 // pred_region
          #allocation11 [shape = 'u32[6]{0}', space=smem, size = 0x18, scoped, tag = 'DMA stride descriptor']
          %s303 = smul.u32 4, %s24
          %s304 = smul.u32 2, %s25
          %306 = vsyncadd %s296, 0
          %s307 = smul.addr %s303, 8
          %s308 = sadd.s32 %s304, %s307
          %s309 = smul.addr %s308, 8
          %s310 = scalar_lea.hbm %s2, %s309
          %s312 = sshll.u32 1, 14
          %s313 = sxor.u32 4294967295, %s312
          %s316 = sshll.u32 7, 18
          %s317 = sxor.u32 4294967295, %s316
          %s318 = sand.u32 0, %s317
          %s320 = sor.u32 %s318, 0
          %s321 = sshll.u32 %s299, 4
          %s322 = int_to_ptr.vmem [resolvable:$true] %s321
          %s323 = sshll.u32 %s310, 4
          %s324 = int_to_ptr.hbm [resolvable:$true] %s323
          %330 = sst [smem:[#allocation11]] 256
          %s331 = scalar_lea.smem [#allocation11], 1
          %332 = sst [smem:[%s331]] 1024
          %s333 = scalar_lea.smem [#allocation11], 2
          %334 = sst [smem:[%s333]] 2
          %s335 = scalar_lea.smem [#allocation11], 3
          %336 = sst [smem:[%s335]] 128
          %s337 = scalar_lea.smem [#allocation11], 4
          %338 = sst [smem:[%s337]] 128
          %s339 = scalar_lea.smem [#allocation11], 5
          %340 = sst [smem:[%s339]] 8
          %342 = dma.general %s322, 1024, %s324, %s296, [#allocation10], [#allocation11], %s320, 0
        $region48: #{tpu_custom_call.1} parent=27 // pred_fallthru
          _
      $region28: #{tpu_custom_call.1} parent=5 // pred_fallthru
        _
      %p343 = scmp.le.s32.totalorder 2, %s15
      // Predicated region
      $region49: #{tpu_custom_call.1} parent=5 // pred_check
        %p344 = pneg %p343
      $region50: #{tpu_custom_call.1} parent=5 // pred_check_branch
        %346 = sbr.rel (%p344) target = $region52
      $region51: #{tpu_custom_call.1} parent=5 // pred_region
        %s347 = ssub.s32 %s15, 2
        // Predicated region
        $region53: #{tpu_custom_call.1} parent=51 // pred_check
          %p348 = pneg %p115
        $region54: #{tpu_custom_call.1} parent=51 // pred_check_branch
          %350 = sbr.rel (%p348) target = $region56
        $region55: #{tpu_custom_call.1} parent=51 // pred_region
          %s351 = sand.u32 %s100, 1
          %s352 = scalar_lea.sflag [#allocation4], %s351
          %s353 = sand.u32 %s100, 1
          %s354 = smul.addr %s353, 64
          %s355 = scalar_lea.vmem [#allocation7], %s354
          %357 = dma.done %s352, 1024
        $region56: #{tpu_custom_call.1} parent=51 // pred_fallthru
          _
      $region52: #{tpu_custom_call.1} parent=5 // pred_fallthru
        _
    $region6: #{tpu_custom_call.1} parent=1 // loop_footer
      %s19 = sadd.s32 1, %s15
    $region7: #{tpu_custom_call.1} parent=1 // loop_footer_branch
      %14 = sbr.rel target = $region3
    $region8: #{tpu_custom_call.1} parent=1 // loop_exit
      _
    %358 = vsyncpa [#allocation3], 1
    %s359 = scalar_lea.sflag [#allocation3], 1
    %360 = vsyncpa %s359, 1
    %361 = vsyncpa [#allocation6], 1
    %362 = vsyncpa [#allocation4], 1
    %s363 = scalar_lea.sflag [#allocation4], 1
    %364 = vsyncpa %s363, 1

</llo_original>
